<compile_context>
chip_gen: v6e
topology: v6e:2x2x1
jax: 0.10.0
libtpu: 0.0.40
codegen_flags: <defaults>
</compile_context>

<pallas_src>
import jax
import jax.numpy as jnp
from jax.experimental import pallas as pl
from jax.experimental.pallas import tpu as pltpu

HIDDEN = 512  # fixed by the module (Conv1 out channels)
N_OUT = 2     # fixed by the module (Conv2 out channels)

# Conservative per-kernel VMEM budget: safe even under v5e's 16 MiB default
# scoped limit, and far under v6e/v7x defaults.
_VMEM_BUDGET_BYTES = 12 << 20
_MAX_TILE = 8192  # keep single-step matmuls a sane size


def _pick_tile(hw, c, itemsize):
    """Largest lane-aligned spatial tile that fits the VMEM budget."""
    # Per spatial element of the tile:
    #   X (double-buffered) + O (double-buffered) + f32 hidden activation H.
    per_elem = 2 * c * itemsize + 2 * N_OUT * itemsize + HIDDEN * 4
    # Resident weights (double-buffered by the pipeline even though constant).
    weights = 2 * (HIDDEN * c + N_OUT * HIDDEN) * itemsize
    avail = max(_VMEM_BUDGET_BYTES - weights, 128 * per_elem)
    tm = min(avail // per_elem, _MAX_TILE)
    if tm >= hw:
        return hw                      # whole row in one tile (full-extent block)
    return max(128, (tm // 128) * 128)  # lane-aligned partial tiling


def _fsda_kernel(x_ref, w1_ref, w2_ref, o_ref):
    # x_ref:  (C, tm)          channels-first spatial tile (tm on lane axis)
    # w1_ref: (HIDDEN, C)      Conv1 weight, resident across the grid
    # w2_ref: (N_OUT, HIDDEN)  Conv2 weight, resident across the grid
    # o_ref:  (N_OUT, tm)      lane-dense output tile
    h = jnp.dot(w1_ref[...], x_ref[...], preferred_element_type=jnp.float32)
    h = jnp.maximum(h, 0.0)  # ReLU on the f32 accumulator
    o_ref[...] = jnp.dot(w2_ref[...], h.astype(w2_ref.dtype),
                         preferred_element_type=jnp.float32).astype(o_ref.dtype)


def fsda_discriminator_forward(x_nchw, w1, w2, *, tm=None, compute_dtype=None):
    """x_nchw: [B, dim, H, W]; w1: [512, dim, 1, 1]; w2: [2, 512, 1, 1].

    tm: optional spatial tile override (otherwise auto-sized to fit VMEM).
    compute_dtype: optionally cast X/W1/W2 (e.g. jnp.bfloat16) to halve HBM
                   read traffic; accumulation stays in f32 either way.
    """
    B, C, H, W = x_nchw.shape
    HW = H * W

    # grad_reverse is identity in the forward pass.
    # TODO(synk): the custom backward (grad * -0.1) is autograd-only; not
    # represented in this forward-only kernel.

    # 1x1 conv weights are already (out_ch, in_ch) after dropping the 1x1 taps
    # -> no transpose needed for the channels-first orientation.
    w1_mat = w1.reshape(HIDDEN, C)      # [512, C]
    w2_mat = w2.reshape(N_OUT, HIDDEN)  # [2, 512]

    # NCHW -> [B, C, H*W]: a pure reshape, no layout shuffle.
    x_cf = x_nchw.reshape(B, C, HW)

    if compute_dtype is not None:
        x_cf = x_cf.astype(compute_dtype)
        w1_mat = w1_mat.astype(compute_dtype)
        w2_mat = w2_mat.astype(compute_dtype)

    itemsize = jnp.dtype(x_cf.dtype).itemsize
    if tm is None:
        tm_eff = _pick_tile(HW, C, itemsize)
    else:
        tm_eff = HW if HW <= tm else max(128, (tm // 128) * 128)

    grid = (B, pl.cdiv(HW, tm_eff))  # partial trailing block handled by Pallas

    out_itemsize = jnp.dtype(x_nchw.dtype).itemsize
    cost = pl.CostEstimate(
        flops=2 * B * HW * (HIDDEN * C + N_OUT * HIDDEN),
        transcendentals=0,
        bytes_accessed=(B * C * HW * itemsize
                        + (HIDDEN * C + N_OUT * HIDDEN) * itemsize
                        + B * N_OUT * HW * out_itemsize),
    )

    out = pl.pallas_call(
        _fsda_kernel,
        out_shape=jax.ShapeDtypeStruct((B, N_OUT, HW), x_nchw.dtype),
        grid_spec=pltpu.PrefetchScalarGridSpec(
            num_scalar_prefetch=0,
            grid=grid,
            in_specs=[
                # X tile: squeeze batch, channels on sublanes, spatial on lanes.
                pl.BlockSpec((pl.Squeezed(), C, tm_eff), lambda b, i: (b, 0, i)),
                # Weights stay resident (same block for every grid step).
                pl.BlockSpec((HIDDEN, C), lambda b, i: (0, 0)),
                pl.BlockSpec((N_OUT, HIDDEN), lambda b, i: (0, 0)),
            ],
            out_specs=pl.BlockSpec((pl.Squeezed(), N_OUT, tm_eff),
                                   lambda b, i: (b, 0, i)),
        ),
        compiler_params=pltpu.CompilerParams(
            # Both axes independent -> shardable across v7x's 2 TensorCores.
            dimension_semantics=("parallel", "parallel")),
        cost_estimate=cost,
    )(x_cf, w1_mat, w2_mat)

    # [B, 2, H*W] is already NCHW ordering — reshape only, no transpose.
    return out.reshape(B, N_OUT, H, W)


def reference_forward(x_nchw, w1, w2):
    """Pure-JAX reference: 1x1 convs as einsums, NCHW semantics."""
    h = jnp.einsum('bchw,oc->bohw', x_nchw, w1.reshape(HIDDEN, x_nchw.shape[1]))
    h = jnp.maximum(h, 0.0)
    return jnp.einsum('bchw,oc->bohw', h, w2.reshape(N_OUT, HIDDEN))


if __name__ == "__main__":
    key = jax.random.PRNGKey(0)
    k_x, k_w1, k_w2 = jax.random.split(key, 3)

    B, dim, H, W = 2, 4, 16, 16
    x = jax.random.normal(k_x, (B, dim, H, W), dtype=jnp.float32)

    # Deterministic parameter init (kaiming-ish scale), shapes per nn.Conv2d:
    #   Conv1.weight: [512, dim, 1, 1], Conv2.weight: [2, 512, 1, 1]
    w1 = jax.random.normal(k_w1, (HIDDEN, dim, 1, 1), dtype=jnp.float32) * (1.0 / dim) ** 0.5
    w2 = jax.random.normal(k_w2, (N_OUT, HIDDEN, 1, 1), dtype=jnp.float32) * (1.0 / HIDDEN) ** 0.5

    out = fsda_discriminator_forward(x, w1, w2)
    out = jax.block_until_ready(out)

    ref = reference_forward(x, w1, w2)
    assert out.shape == (B, N_OUT, H, W), out.shape
    assert jnp.allclose(out, ref, atol=1e-4, rtol=1e-4), float(jnp.max(jnp.abs(out - ref)))

    print("KERNEL_OK")
</pallas_src>

<mosaic_0001>
module attributes {stable_mosaic.version = 11 : i64} {
  func.func @_fsda_kernel(%arg0: i32, %arg1: i32, %arg2: memref<1x4x256xf32, #tpu.memory_space<vmem>>, %arg3: memref<512x4xf32, #tpu.memory_space<vmem>>, %arg4: memref<2x512xf32, #tpu.memory_space<vmem>>, %arg5: memref<1x2x256xf32, #tpu.memory_space<vmem>>) attributes {dimension_semantics = [#tpu.dimension_semantics<parallel>, #tpu.dimension_semantics<parallel>], iteration_bounds = array<i64: 2, 1>, scalar_prefetch = 0 : i64, scratch_operands = 0 : i64, tpu.core_type = #tpu.core_type<tc>, window_params = [{transform_indices = @transform_0, window_bounds = array<i64: 1, 4, 256>}, {pipeline_mode = #tpu.pipeline_mode<synchronous>, transform_indices = @transform_1, window_bounds = array<i64: 512, 4>}, {pipeline_mode = #tpu.pipeline_mode<synchronous>, transform_indices = @transform_2, window_bounds = array<i64: 2, 512>}, {transform_indices = @transform_3, window_bounds = array<i64: 1, 2, 256>}]} {
    %c0 = arith.constant 0 : index
    %c0_0 = arith.constant 0 : index
    %0 = vector.load %arg3[%c0, %c0_0] : memref<512x4xf32, #tpu.memory_space<vmem>>, vector<512x4xf32>
    %c0_1 = arith.constant 0 : index
    %c0_2 = arith.constant 0 : index
    %c0_3 = arith.constant 0 : index
    %1 = vector.load %arg2[%c0_1, %c0_2, %c0_3] : memref<1x4x256xf32, #tpu.memory_space<vmem>>, vector<1x4x256xf32>
    %2 = vector.shape_cast %1 : vector<1x4x256xf32> to vector<4x256xf32>
    %cst = arith.constant dense<0.000000e+00> : vector<512x256xf32>
    %3 = tpu.matmul %0, %2, %cst {dimension_numbers = #tpu.dot_dimension_numbers<[1], [0], [0], [1], [0, 0, 1, 1], [], []>} : vector<512x4xf32>, vector<4x256xf32>, vector<512x256xf32> -> vector<512x256xf32>
    %cst_4 = arith.constant 0.000000e+00 : f32
    %4 = vector.broadcast %cst_4 : f32 to vector<512x256xf32>
    %5 = arith.maximumf %3, %4 : vector<512x256xf32>
    %c0_5 = arith.constant 0 : index
    %c0_6 = arith.constant 0 : index
    %6 = vector.load %arg4[%c0_5, %c0_6] : memref<2x512xf32, #tpu.memory_space<vmem>>, vector<2x512xf32>
    %cst_7 = arith.constant dense<0.000000e+00> : vector<2x256xf32>
    %7 = tpu.matmul %6, %5, %cst_7 {dimension_numbers = #tpu.dot_dimension_numbers<[1], [0], [0], [1], [0, 0, 1, 1], [], []>} : vector<2x512xf32>, vector<512x256xf32>, vector<2x256xf32> -> vector<2x256xf32>
    %c0_8 = arith.constant 0 : index
    %c0_9 = arith.constant 0 : index
    %c0_10 = arith.constant 0 : index
    %8 = vector.load %arg5[%c0_8, %c0_9, %c0_10] : memref<1x2x256xf32, #tpu.memory_space<vmem>>, vector<1x2x256xf32>
    %9 = vector.shape_cast %8 : vector<1x2x256xf32> to vector<2x256xf32>
    %10 = vector.shape_cast %7 : vector<2x256xf32> to vector<1x2x256xf32>
    tpu.vector_store %arg5[%c0_8, %c0_9, %c0_10], %10 {strides = array<i32>} : memref<1x2x256xf32, #tpu.memory_space<vmem>>, vector<1x2x256xf32>,
    return
  }
  func.func @transform_0(%arg0: i32, %arg1: i32) -> (i32, i32, i32) {
    %c0_i32 = arith.constant 0 : i32
    %c0_i32_0 = arith.constant 0 : i32
    return %arg0, %c0_i32, %arg1 : i32, i32, i32
  }
  func.func @transform_1(%arg0: i32, %arg1: i32) -> (i32, i32) {
    %c0_i32 = arith.constant 0 : i32
    %c0_i32_0 = arith.constant 0 : i32
    %c0_i32_1 = arith.constant 0 : i32
    return %c0_i32, %c0_i32_0 : i32, i32
  }
  func.func @transform_2(%arg0: i32, %arg1: i32) -> (i32, i32) {
    %c0_i32 = arith.constant 0 : i32
    %c0_i32_0 = arith.constant 0 : i32
    %c0_i32_1 = arith.constant 0 : i32
    return %c0_i32, %c0_i32_0 : i32, i32
  }
  func.func @transform_3(%arg0: i32, %arg1: i32) -> (i32, i32, i32) {
    %c0_i32 = arith.constant 0 : i32
    %c0_i32_0 = arith.constant 0 : i32
    return %arg0, %c0_i32, %arg1 : i32, i32, i32
  }
}

</mosaic_0001>

<llo_original>
// kernel: tpu_custom_call.1
$region0: #{tpu_custom_call.1}
  #allocation0 [shape = 'u32[]', space=smem, size = 0x4, offset = 0x4, fixed_abs, tag = 'smem constant byte address 0x4 - core index']
  #allocation1 [shape = 'u32[144,128]{1,0:T(1,128)}', space=vmem, size = 0x12000, scoped, tag = 'internal scratch']
  %s0 = inlined_call_operand.vmem [shape: f32[2,4,256], index: 0, kind: input, shape index: {}]
  %s1 = inlined_call_operand.vmem [shape: f32[512,4], index: 1, kind: input, shape index: {}]
  %s2 = inlined_call_operand.vmem [shape: f32[2,512], index: 2, kind: input, shape index: {}]
  %s3 = inlined_call_operand.hbm [shape: f32[2,2,256], index: 3, kind: output, shape index: {}]
  %s4 = sld [smem:[#allocation0]]
  $region45: #{tpu_custom_call.1} parent=0
    _
  %s6 = ssub.s32 1, %s4
  %s7 = scalar_select 0, %s6, %s4
  $region1: #{tpu_custom_call.1} parent=0
    #allocation2 [shape = 'u8[4096]{0}', space=vmem, size = 0x1000, scoped, tag = 'output window, operand 0']
    #allocation3 [shape = 's32[2]{0}', space=sflag, size = 0x8, scoped, tag = 'scoped memory for tpu_custom_call.1']
    %8 = vsyncpa [#allocation3], 0
    %s9 = scalar_lea.sflag [#allocation3], 1
    %10 = vsyncpa %s9, 0
    loop: start=0, step=1, limit=4
    $region2: #{tpu_custom_call.1} parent=1 // loop_pre_header
      _
    $region3: #{tpu_custom_call.1} parent=1 // loop_header
      %s12 = sphi 0, %s16
      %p13 = scmp.ge.s32.totalorder %s12, 4
      %s19 = sphi 0, %s31
      %s20 = sphi 0, %s27
      %s21 = sphi 0, %s19
      %s22 = sphi 0, %s20
      %s23 = sphi 0, %s21
      %s24 = sphi 0, %s22
      %s36 = sphi 0, %s38
      %s39 = sphi 0, %s36
      %s40 = sphi 0, %s39
      %s56 = sphi 0, %s40
      %s60 = sphi 0, %s60
      %s62 = sphi 0, %s60
      %s63 = sphi 0, %s62
      %s77 = sphi 0, %s63
      %s81 = sphi 0, %s81
      %s83 = sphi 0, %s81
      %s84 = sphi 0, %s83
      %s98 = sphi 0, %s84
      %s106 = sphi 0, %s108
      %s109 = sphi 0, %s106
      %s110 = sphi 0, %s109
      %s126 = sphi 0, %s110
    $region4: #{tpu_custom_call.1} parent=1 // loop_header_branch
      %15 = sbr.rel (%p13) target = $region8
    $region5: #{tpu_custom_call.1} parent=1 // loop_body
      %s17 = ssub.s32 %s12, 1
      %s18 = ssub.s32 %s12, 2
      %s25 = sadd.s32 1, %s20
      %p26 = scmp.ge.s32.totalorder %s25, 1
      %s27 = scalar_select %p26, 0, %s25
      %s28 = sadd.s32 1, %s19
      %s29 = scalar_select %p26, %s28, %s19
      %p30 = scmp.ge.s32.totalorder %s29, 2
      %s31 = scalar_select %p30, 0, %s29
      %s32 = ssub.s32 %s19, %s31
      %s33 = ssub.s32 %s20, %s27
      %s34 = sor.u32 %s32, %s33
      %p35 = scmp.eq.s32.totalorder %s34, 0
      %s37 = sadd.s32 %s36, 1
      %s38 = scalar_select %p35, %s36, %s37
      %p41 = pneg %p35
      %p42 = scmp.eq.s32.totalorder %s12, 1
      %p43 = por %p41, %p42
      %p44 = scmp.ne.s32.totalorder %s36, %s39
      %p45 = scmp.eq.s32.totalorder %s12, 0
      %p46 = por %p44, %p45
      %p47 = scmp.ne.s32.totalorder %s36, %s39
      %p48 = scmp.eq.s32.totalorder %s17, 1
      %p49 = por %p47, %p48
      %p50 = scmp.ne.s32.totalorder %s39, %s40
      %p51 = scmp.eq.s32.totalorder %s17, 0
      %p52 = por %p50, %p51
      %p53 = scmp.ne.s32.totalorder %s39, %s40
      %p54 = scmp.eq.s32.totalorder %s18, 1
      %p55 = por %p53, %p54
      %p57 = scmp.ne.s32.totalorder %s40, %s56
      %p58 = scmp.eq.s32.totalorder %s18, 0
      %p59 = por %p57, %p58
      %s61 = sadd.s32 %s60, 1
      %p64 = scmp.eq.s32.totalorder %s12, 1
      %p65 = scmp.ne.s32.totalorder %s60, %s62
      %p66 = scmp.eq.s32.totalorder %s12, 0
      %p67 = por %p65, %p66
      %p68 = scmp.ne.s32.totalorder %s60, %s62
      %p69 = scmp.eq.s32.totalorder %s17, 1
      %p70 = por %p68, %p69
      %p71 = scmp.ne.s32.totalorder %s62, %s63
      %p72 = scmp.eq.s32.totalorder %s17, 0
      %p73 = por %p71, %p72
      %p74 = scmp.ne.s32.totalorder %s62, %s63
      %p75 = scmp.eq.s32.totalorder %s18, 1
      %p76 = por %p74, %p75
      %p78 = scmp.ne.s32.totalorder %s63, %s77
      %p79 = scmp.eq.s32.totalorder %s18, 0
      %p80 = por %p78, %p79
      %s82 = sadd.s32 %s81, 1
      %p85 = scmp.eq.s32.totalorder %s12, 1
      %p86 = scmp.ne.s32.totalorder %s81, %s83
      %p87 = scmp.eq.s32.totalorder %s12, 0
      %p88 = por %p86, %p87
      %p89 = scmp.ne.s32.totalorder %s81, %s83
      %p90 = scmp.eq.s32.totalorder %s17, 1
      %p91 = por %p89, %p90
      %p92 = scmp.ne.s32.totalorder %s83, %s84
      %p93 = scmp.eq.s32.totalorder %s17, 0
      %p94 = por %p92, %p93
      %p95 = scmp.ne.s32.totalorder %s83, %s84
      %p96 = scmp.eq.s32.totalorder %s18, 1
      %p97 = por %p95, %p96
      %p99 = scmp.ne.s32.totalorder %s84, %s98
      %p100 = scmp.eq.s32.totalorder %s18, 0
      %p101 = por %p99, %p100
      %s102 = ssub.s32 %s19, %s31
      %s103 = ssub.s32 %s20, %s27
      %s104 = sor.u32 %s102, %s103
      %p105 = scmp.eq.s32.totalorder %s104, 0
      %s107 = sadd.s32 %s106, 1
      %s108 = scalar_select %p105, %s106, %s107
      %p111 = pneg %p105
      %p112 = scmp.eq.s32.totalorder %s12, 1
      %p113 = por %p111, %p112
      %p114 = scmp.ne.s32.totalorder %s106, %s109
      %p115 = scmp.eq.s32.totalorder %s12, 0
      %p116 = por %p114, %p115
      %p117 = scmp.ne.s32.totalorder %s106, %s109
      %p118 = scmp.eq.s32.totalorder %s17, 1
      %p119 = por %p117, %p118
      %p120 = scmp.ne.s32.totalorder %s109, %s110
      %p121 = scmp.eq.s32.totalorder %s17, 0
      %p122 = por %p120, %p121
      %p123 = scmp.ne.s32.totalorder %s109, %s110
      %p124 = scmp.eq.s32.totalorder %s18, 1
      %p125 = por %p123, %p124
      %p127 = scmp.ne.s32.totalorder %s110, %s126
      %p128 = scmp.eq.s32.totalorder %s18, 0
      %p129 = por %p127, %p128
      %p130 = scmp.le.s32.totalorder 1, %s12
      %p131 = scmp.lt.s32.totalorder %s12, 3
      %p132 = pnand %p130, %p131
      %p133 = pneg %p132
      // Predicated region
      $region9: #{tpu_custom_call.1} parent=5 // pred_check
        _
      $region10: #{tpu_custom_call.1} parent=5 // pred_check_branch
        %135 = sbr.rel (%p132) target = $region12
      $region11: #{tpu_custom_call.1} parent=5 // pred_region
        %s136 = ssub.s32 %s12, 1
        // Predicated region
        $region13: #{tpu_custom_call.1} parent=11 // pred_check
          %p137 = pneg %p73
        $region14: #{tpu_custom_call.1} parent=11 // pred_check_branch
          %139 = sbr.rel (%p137) target = $region16
        $region15: #{tpu_custom_call.1} parent=11 // pred_region
          _
        $region16: #{tpu_custom_call.1} parent=11 // pred_fallthru
          _
        // Predicated region
        $region17: #{tpu_custom_call.1} parent=11 // pred_check
          %p140 = pneg %p94
        $region18: #{tpu_custom_call.1} parent=11 // pred_check_branch
          %142 = sbr.rel (%p140) target = $region20
        $region19: #{tpu_custom_call.1} parent=11 // pred_region
          _
        $region20: #{tpu_custom_call.1} parent=11 // pred_fallthru
          _
      $region12: #{tpu_custom_call.1} parent=5 // pred_fallthru
        _
      %p143 = scmp.lt.s32.totalorder %s12, 2
      // Predicated region
      $region21: #{tpu_custom_call.1} parent=5 // pred_check
        %p144 = pneg %p143
      $region22: #{tpu_custom_call.1} parent=5 // pred_check_branch
        %146 = sbr.rel (%p144) target = $region24
      $region23: #{tpu_custom_call.1} parent=5 // pred_region
        // Predicated region
        $region25: #{tpu_custom_call.1} parent=23 // pred_check
          %p147 = pneg %p46
        $region26: #{tpu_custom_call.1} parent=23 // pred_check_branch
          %149 = sbr.rel (%p147) target = $region28
        $region27: #{tpu_custom_call.1} parent=23 // pred_region
          %s150 = smul.u32 2, %s20
          %p151 = scmp.lt.s32.totalorder %s19, 1
          %s152 = scalar_select %p151, %s19, 1
          %p153 = scmp.lt.s32.totalorder %s150, 1
          %s154 = scalar_select %p153, %s150, 1
          %s155 = smul.addr %s152, 2
          %s156 = sadd.s32 %s154, %s155
          %s157 = smul.addr %s156, 4
          %s158 = scalar_lea.vmem %s0, %s157
          %s159 = smul.u32 2, %s20
        $region28: #{tpu_custom_call.1} parent=23 // pred_fallthru
          _
      $region24: #{tpu_custom_call.1} parent=5 // pred_fallthru
        _
      %p160 = scmp.le.s32.totalorder 1, %s12
      %p161 = scmp.lt.s32.totalorder %s12, 3
      %p162 = pnand %p160, %p161
      %p163 = pneg %p162
      // Predicated region
      $region29: #{tpu_custom_call.1} parent=5 // pred_check
        _
      $region30: #{tpu_custom_call.1} parent=5 // pred_check_branch
        %165 = sbr.rel (%p162) target = $region32
      $region31: #{tpu_custom_call.1} parent=5 // pred_region
        %s166 = ssub.s32 %s12, 1
        %s167 = smul.u32 2, %s22
        %p168 = scmp.lt.s32.totalorder %s21, 1
        %s169 = scalar_select %p168, %s21, 1
        %p170 = scmp.lt.s32.totalorder %s167, 1
        %s171 = scalar_select %p170, %s167, 1
        %s172 = smul.addr %s169, 2
        %s173 = sadd.s32 %s171, %s172
        %s174 = smul.addr %s173, 4
        %s175 = scalar_lea.vmem %s0, %s174
        %p176 = pneg %p52
        %p177 = pneg %p49
        %p178 = pneg %p73
        %p179 = pneg %p70
        %p180 = pneg %p94
        %p181 = pneg %p91
        %p182 = pneg %p122
        %p183 = pneg %p119
        %s184 = sand.u32 %s109, 1
        %s185 = scalar_lea.sflag [#allocation3], %s184
        %s186 = sand.u32 %s109, 1
        %s187 = smul.addr %s186, 4
        %s188 = scalar_lea.vmem [#allocation2], %s187
        %s189 = smul.u32 2, %s22
        %p190 = scmp.lt.s32.totalorder %s21, 1
        %s191 = scalar_select %p190, %s21, 1
        %p192 = scmp.lt.s32.totalorder %s189, 1
        %s193 = scalar_select %p192, %s189, 1
        %s194 = smul.addr %s191, 2
        %s195 = sadd.s32 %s193, %s194
        %s196 = smul.addr %s195, 4
        %s197 = scalar_lea.vmem %s0, %s196
        %s198 = smul.u32 2, %s22
        %s199 = smul.u32 2, %s22
        %v200 = vld [vmem:[%s1] sm:$0xff]
        %v201 = vld [vmem:[%s1 + $0x8] sm:$0xff]
        %v202 = vld [vmem:[%s1 + $0x10] sm:$0xff]
        %v203 = vld [vmem:[%s1 + $0x18] sm:$0xff]
        %v204 = vld [vmem:[%s1 + $0x20] sm:$0xff]
        %v205 = vld [vmem:[%s1 + $0x28] sm:$0xff]
        %v206 = vld [vmem:[%s1 + $0x30] sm:$0xff]
        %v207 = vld [vmem:[%s1 + $0x38] sm:$0xff]
        %v208 = vld [vmem:[%s1 + $0x40] sm:$0xff]
        %v209 = vld [vmem:[%s1 + $0x48] sm:$0xff]
        %v210 = vld [vmem:[%s1 + $0x50] sm:$0xff]
        %v211 = vld [vmem:[%s1 + $0x58] sm:$0xff]
        %v212 = vld [vmem:[%s1 + $0x60] sm:$0xff]
        %v213 = vld [vmem:[%s1 + $0x68] sm:$0xff]
        %v214 = vld [vmem:[%s1 + $0x70] sm:$0xff]
        %v215 = vld [vmem:[%s1 + $0x78] sm:$0xff]
        %v216 = vld [vmem:[%s1 + $0x80] sm:$0xff]
        %v217 = vld [vmem:[%s1 + $0x88] sm:$0xff]
        %v218 = vld [vmem:[%s1 + $0x90] sm:$0xff]
        %v219 = vld [vmem:[%s1 + $0x98] sm:$0xff]
        %v220 = vld [vmem:[%s1 + $0xa0] sm:$0xff]
        %v221 = vld [vmem:[%s1 + $0xa8] sm:$0xff]
        %v222 = vld [vmem:[%s1 + $0xb0] sm:$0xff]
        %v223 = vld [vmem:[%s1 + $0xb8] sm:$0xff]
        %v224 = vld [vmem:[%s1 + $0xc0] sm:$0xff]
        %v225 = vld [vmem:[%s1 + $0xc8] sm:$0xff]
        %v226 = vld [vmem:[%s1 + $0xd0] sm:$0xff]
        %v227 = vld [vmem:[%s1 + $0xd8] sm:$0xff]
        %v228 = vld [vmem:[%s1 + $0xe0] sm:$0xff]
        %v229 = vld [vmem:[%s1 + $0xe8] sm:$0xff]
        %v230 = vld [vmem:[%s1 + $0xf0] sm:$0xff]
        %v231 = vld [vmem:[%s1 + $0xf8] sm:$0xff]
        %v232 = vld [vmem:[%s1 + $0x100] sm:$0xff]
        %v233 = vld [vmem:[%s1 + $0x108] sm:$0xff]
        %v234 = vld [vmem:[%s1 + $0x110] sm:$0xff]
        %v235 = vld [vmem:[%s1 + $0x118] sm:$0xff]
        %v236 = vld [vmem:[%s1 + $0x120] sm:$0xff]
        %v237 = vld [vmem:[%s1 + $0x128] sm:$0xff]
        %v238 = vld [vmem:[%s1 + $0x130] sm:$0xff]
        %v239 = vld [vmem:[%s1 + $0x138] sm:$0xff]
        %v240 = vld [vmem:[%s1 + $0x140] sm:$0xff]
        %v241 = vld [vmem:[%s1 + $0x148] sm:$0xff]
        %v242 = vld [vmem:[%s1 + $0x150] sm:$0xff]
        %v243 = vld [vmem:[%s1 + $0x158] sm:$0xff]
        %v244 = vld [vmem:[%s1 + $0x160] sm:$0xff]
        %v245 = vld [vmem:[%s1 + $0x168] sm:$0xff]
        %v246 = vld [vmem:[%s1 + $0x170] sm:$0xff]
        %v247 = vld [vmem:[%s1 + $0x178] sm:$0xff]
        %v248 = vld [vmem:[%s1 + $0x180] sm:$0xff]
        %v249 = vld [vmem:[%s1 + $0x188] sm:$0xff]
        %v250 = vld [vmem:[%s1 + $0x190] sm:$0xff]
        %v251 = vld [vmem:[%s1 + $0x198] sm:$0xff]
        %v252 = vld [vmem:[%s1 + $0x1a0] sm:$0xff]
        %v253 = vld [vmem:[%s1 + $0x1a8] sm:$0xff]
        %v254 = vld [vmem:[%s1 + $0x1b0] sm:$0xff]
        %v255 = vld [vmem:[%s1 + $0x1b8] sm:$0xff]
        %v256 = vld [vmem:[%s1 + $0x1c0] sm:$0xff]
        %v257 = vld [vmem:[%s1 + $0x1c8] sm:$0xff]
        %v258 = vld [vmem:[%s1 + $0x1d0] sm:$0xff]
        %v259 = vld [vmem:[%s1 + $0x1d8] sm:$0xff]
        %v260 = vld [vmem:[%s1 + $0x1e0] sm:$0xff]
        %v261 = vld [vmem:[%s1 + $0x1e8] sm:$0xff]
        %v262 = vld [vmem:[%s1 + $0x1f0] sm:$0xff]
        %v263 = vld [vmem:[%s1 + $0x1f8] sm:$0xff]
        %v264 = vld [vmem:[%s197] sm:$0xff]
        %v266 = vcombine.high %v264, %v264
        %vm267 = vcmask 31744
        %v269 = vsel %vm267, %v200, 0
        %v272 = vsel %vm267, %v201, 0
        %v275 = vsel %vm267, %v202, 0
        %v278 = vsel %vm267, %v203, 0
        %v281 = vsel %vm267, %v204, 0
        %v284 = vsel %vm267, %v205, 0
        %v287 = vsel %vm267, %v206, 0
        %v290 = vsel %vm267, %v207, 0
        %v293 = vsel %vm267, %v208, 0
        %v296 = vsel %vm267, %v209, 0
        %v299 = vsel %vm267, %v210, 0
        %v302 = vsel %vm267, %v211, 0
        %v305 = vsel %vm267, %v212, 0
        %v308 = vsel %vm267, %v213, 0
        %v311 = vsel %vm267, %v214, 0
        %v314 = vsel %vm267, %v215, 0
        %v317 = vsel %vm267, %v216, 0
        %v320 = vsel %vm267, %v217, 0
        %v323 = vsel %vm267, %v218, 0
        %v326 = vsel %vm267, %v219, 0
        %v329 = vsel %vm267, %v220, 0
        %v332 = vsel %vm267, %v221, 0
        %v335 = vsel %vm267, %v222, 0
        %v338 = vsel %vm267, %v223, 0
        %v341 = vsel %vm267, %v224, 0
        %v344 = vsel %vm267, %v225, 0
        %v347 = vsel %vm267, %v226, 0
        %v350 = vsel %vm267, %v227, 0
        %v353 = vsel %vm267, %v228, 0
        %v356 = vsel %vm267, %v229, 0
        %v359 = vsel %vm267, %v230, 0
        %v362 = vsel %vm267, %v231, 0
        %v365 = vsel %vm267, %v232, 0
        %v368 = vsel %vm267, %v233, 0
        %v371 = vsel %vm267, %v234, 0
        %v374 = vsel %vm267, %v235, 0
        %v377 = vsel %vm267, %v236, 0
        %v380 = vsel %vm267, %v237, 0
        %v383 = vsel %vm267, %v238, 0
        %v386 = vsel %vm267, %v239, 0
        %v389 = vsel %vm267, %v240, 0
        %v392 = vsel %vm267, %v241, 0
        %v395 = vsel %vm267, %v242, 0
        %v398 = vsel %vm267, %v243, 0
        %v401 = vsel %vm267, %v244, 0
        %v404 = vsel %vm267, %v245, 0
        %v407 = vsel %vm267, %v246, 0
        %v410 = vsel %vm267, %v247, 0
        %v413 = vsel %vm267, %v248, 0
        %v416 = vsel %vm267, %v249, 0
        %v419 = vsel %vm267, %v250, 0
        %v422 = vsel %vm267, %v251, 0
        %v425 = vsel %vm267, %v252, 0
        %v428 = vsel %vm267, %v253, 0
        %v431 = vsel %vm267, %v254, 0
        %v434 = vsel %vm267, %v255, 0
        %v437 = vsel %vm267, %v256, 0
        %v440 = vsel %vm267, %v257, 0
        %v443 = vsel %vm267, %v258, 0
        %v446 = vsel %vm267, %v259, 0
        %v449 = vsel %vm267, %v260, 0
        %v452 = vsel %vm267, %v261, 0
        %v455 = vsel %vm267, %v262, 0
        %v458 = vsel %vm267, %v263, 0
        %vm460 = vcmask 1043456
        %v461 = vsel %vm460, %v264, 0
        %v463 = vsel %vm460, %v266, 0
        %465 = vmatprep.subr.mxu0 0.0
        %466 = vmatpush1.msra.mxu0 0.0
        %467 = vmatprep.subr.mxu0 0.0
        %468 = vmatpush1.msra.mxu0 0.0
        %469 = vmatprep.subr.mxu0 0.0
        %470 = vmatpush1.msra.mxu0 0.0
        %471 = vmatprep.subr.mxu0 0.0
        %472 = vmatpush1.msra.mxu0 0.0
        %473 = vmatprep.subr.mxu0 0.0
        %474 = vmatpush1.msra.mxu0 0.0
        %475 = vmatprep.subr.mxu0 0.0
        %476 = vmatpush1.msra.mxu0 0.0
        %477 = vmatprep.subr.mxu0 0.0
        %478 = vmatpush1.msra.mxu0 0.0
        %479 = vmatprep.subr.mxu0 0.0
        %480 = vmatpush1.msra.mxu0 0.0
        %481 = vmatprep.subr.mxu0 0.0
        %482 = vmatpush1.msra.mxu0 0.0
        %483 = vmatprep.subr.mxu0 0.0
        %484 = vmatpush1.msra.mxu0 0.0
        %485 = vmatprep.subr.mxu0 0.0
        %486 = vmatpush1.msra.mxu0 0.0
        %487 = vmatprep.subr.mxu0 0.0
        %488 = vmatpush1.msra.mxu0 0.0
        %489 = vmatprep.subr.mxu0 0.0
        %490 = vmatpush1.msra.mxu0 0.0
        %491 = vmatprep.subr.mxu0 0.0
        %492 = vmatpush1.msra.mxu0 0.0
        %493 = vmatprep.subr.mxu0 0.0
        %494 = vmatpush1.msra.mxu0 0.0
        %495 = vmatprep.subr.mxu0 %v463
        %496 = vmatpush1.msra.mxu0 %v461
        %497 = vmatprep.subr.mxu0 0.0
        %498 = vmatpush2.msra.mxu0 0.0
        %499 = vmatprep.subr.mxu0 0.0
        %500 = vmatpush2.msra.mxu0 0.0
        %501 = vmatprep.subr.mxu0 0.0
        %502 = vmatpush2.msra.mxu0 0.0
        %503 = vmatprep.subr.mxu0 0.0
        %504 = vmatpush2.msra.mxu0 0.0
        %505 = vmatprep.subr.mxu0 0.0
        %506 = vmatpush2.msra.mxu0 0.0
        %507 = vmatprep.subr.mxu0 0.0
        %508 = vmatpush2.msra.mxu0 0.0
        %509 = vmatprep.subr.mxu0 0.0
        %510 = vmatpush2.msra.mxu0 0.0
        %511 = vmatprep.subr.mxu0 0.0
        %512 = vmatpush2.msra.mxu0 0.0
        %513 = vmatprep.subr.mxu0 0.0
        %514 = vmatpush2.msra.mxu0 0.0
        %515 = vmatprep.subr.mxu0 0.0
        %516 = vmatpush2.msra.mxu0 0.0
        %517 = vmatprep.subr.mxu0 0.0
        %518 = vmatpush2.msra.mxu0 0.0
        %519 = vmatprep.subr.mxu0 0.0
        %520 = vmatpush2.msra.mxu0 0.0
        %521 = vmatprep.subr.mxu0 0.0
        %522 = vmatpush2.msra.mxu0 0.0
        %523 = vmatprep.subr.mxu0 0.0
        %524 = vmatpush2.msra.mxu0 0.0
        %525 = vmatprep.subr.mxu0 0.0
        %526 = vmatpush2.msra.mxu0 0.0
        %527 = vmatprep.subr.mxu0 0.0
        %528 = vmatpush2.msra.mxu0 0.0
        %529 = vmatprep.mubr.f32.mxu0 0.0
        %530 = vmatmul.mubr.f32.gmra.mxu0 %v269
        %v531 = vpop.f32.mrf.mxu0
        %v532 = vadd.f32 0.0, %v531
        %v533 = vpop.f32.mrf.mxu0
        %v534 = vadd.f32 0.0, %v533
        %535 = vmatprep.mubr.f32.mxu0 0.0
        %536 = vmatmul.mubr.f32.gmra.mxu0 %v272
        %v537 = vpop.f32.mrf.mxu0
        %v538 = vadd.f32 0.0, %v537
        %v539 = vpop.f32.mrf.mxu0
        %v540 = vadd.f32 0.0, %v539
        %541 = vmatprep.mubr.f32.mxu0 0.0
        %542 = vmatmul.mubr.f32.gmra.mxu0 %v275
        %v543 = vpop.f32.mrf.mxu0
        %v544 = vadd.f32 0.0, %v543
        %v545 = vpop.f32.mrf.mxu0
        %v546 = vadd.f32 0.0, %v545
        %547 = vmatprep.mubr.f32.mxu0 0.0
        %548 = vmatmul.mubr.f32.gmra.mxu0 %v278
        %v549 = vpop.f32.mrf.mxu0
        %v550 = vadd.f32 0.0, %v549
        %v551 = vpop.f32.mrf.mxu0
        %v552 = vadd.f32 0.0, %v551
        %553 = vmatprep.mubr.f32.mxu0 0.0
        %554 = vmatmul.mubr.f32.gmra.mxu0 %v281
        %v555 = vpop.f32.mrf.mxu0
        %v556 = vadd.f32 0.0, %v555
        %v557 = vpop.f32.mrf.mxu0
        %v558 = vadd.f32 0.0, %v557
        %559 = vmatprep.mubr.f32.mxu0 0.0
        %560 = vmatmul.mubr.f32.gmra.mxu0 %v284
        %v561 = vpop.f32.mrf.mxu0
        %v562 = vadd.f32 0.0, %v561
        %v563 = vpop.f32.mrf.mxu0
        %v564 = vadd.f32 0.0, %v563
        %565 = vmatprep.mubr.f32.mxu0 0.0
        %566 = vmatmul.mubr.f32.gmra.mxu0 %v287
        %v567 = vpop.f32.mrf.mxu0
        %v568 = vadd.f32 0.0, %v567
        %v569 = vpop.f32.mrf.mxu0
        %v570 = vadd.f32 0.0, %v569
        %571 = vmatprep.mubr.f32.mxu0 0.0
        %572 = vmatmul.mubr.f32.gmra.mxu0 %v290
        %v573 = vpop.f32.mrf.mxu0
        %v574 = vadd.f32 0.0, %v573
        %v575 = vpop.f32.mrf.mxu0
        %v576 = vadd.f32 0.0, %v575
        %577 = vmatprep.mubr.f32.mxu0 0.0
        %578 = vmatmul.mubr.f32.gmra.mxu0 %v293
        %v579 = vpop.f32.mrf.mxu0
        %v580 = vadd.f32 0.0, %v579
        %v581 = vpop.f32.mrf.mxu0
        %v582 = vadd.f32 0.0, %v581
        %583 = vmatprep.mubr.f32.mxu0 0.0
        %584 = vmatmul.mubr.f32.gmra.mxu0 %v296
        %v585 = vpop.f32.mrf.mxu0
        %v586 = vadd.f32 0.0, %v585
        %v587 = vpop.f32.mrf.mxu0
        %v588 = vadd.f32 0.0, %v587
        %589 = vmatprep.mubr.f32.mxu0 0.0
        %590 = vmatmul.mubr.f32.gmra.mxu0 %v299
        %v591 = vpop.f32.mrf.mxu0
        %v592 = vadd.f32 0.0, %v591
        %v593 = vpop.f32.mrf.mxu0
        %v594 = vadd.f32 0.0, %v593
        %595 = vmatprep.mubr.f32.mxu0 0.0
        %596 = vmatmul.mubr.f32.gmra.mxu0 %v302
        %v597 = vpop.f32.mrf.mxu0
        %v598 = vadd.f32 0.0, %v597
        %v599 = vpop.f32.mrf.mxu0
        %v600 = vadd.f32 0.0, %v599
        %601 = vmatprep.mubr.f32.mxu0 0.0
        %602 = vmatmul.mubr.f32.gmra.mxu0 %v305
        %v603 = vpop.f32.mrf.mxu0
        %v604 = vadd.f32 0.0, %v603
        %v605 = vpop.f32.mrf.mxu0
        %v606 = vadd.f32 0.0, %v605
        %607 = vmatprep.mubr.f32.mxu0 0.0
        %608 = vmatmul.mubr.f32.gmra.mxu0 %v308
        %v609 = vpop.f32.mrf.mxu0
        %v610 = vadd.f32 0.0, %v609
        %v611 = vpop.f32.mrf.mxu0
        %v612 = vadd.f32 0.0, %v611
        %613 = vmatprep.mubr.f32.mxu0 0.0
        %614 = vmatmul.mubr.f32.gmra.mxu0 %v311
        %v615 = vpop.f32.mrf.mxu0
        %v616 = vadd.f32 0.0, %v615
        %v617 = vpop.f32.mrf.mxu0
        %v618 = vadd.f32 0.0, %v617
        %619 = vmatprep.mubr.f32.mxu0 0.0
        %620 = vmatmul.mubr.f32.gmra.mxu0 %v314
        %v621 = vpop.f32.mrf.mxu0
        %v622 = vadd.f32 0.0, %v621
        %v623 = vpop.f32.mrf.mxu0
        %v624 = vadd.f32 0.0, %v623
        %625 = vmatprep.mubr.f32.mxu0 0.0
        %626 = vmatmul.mubr.f32.gmra.mxu0 %v317
        %v627 = vpop.f32.mrf.mxu0
        %v628 = vadd.f32 0.0, %v627
        %v629 = vpop.f32.mrf.mxu0
        %v630 = vadd.f32 0.0, %v629
        %631 = vmatprep.mubr.f32.mxu0 0.0
        %632 = vmatmul.mubr.f32.gmra.mxu0 %v320
        %v633 = vpop.f32.mrf.mxu0
        %v634 = vadd.f32 0.0, %v633
        %v635 = vpop.f32.mrf.mxu0
        %v636 = vadd.f32 0.0, %v635
        %637 = vmatprep.mubr.f32.mxu0 0.0
        %638 = vmatmul.mubr.f32.gmra.mxu0 %v323
        %v639 = vpop.f32.mrf.mxu0
        %v640 = vadd.f32 0.0, %v639
        %v641 = vpop.f32.mrf.mxu0
        %v642 = vadd.f32 0.0, %v641
        %643 = vmatprep.mubr.f32.mxu0 0.0
        %644 = vmatmul.mubr.f32.gmra.mxu0 %v326
        %v645 = vpop.f32.mrf.mxu0
        %v646 = vadd.f32 0.0, %v645
        %v647 = vpop.f32.mrf.mxu0
        %v648 = vadd.f32 0.0, %v647
        %649 = vmatprep.mubr.f32.mxu0 0.0
        %650 = vmatmul.mubr.f32.gmra.mxu0 %v329
        %v651 = vpop.f32.mrf.mxu0
        %v652 = vadd.f32 0.0, %v651
        %v653 = vpop.f32.mrf.mxu0
        %v654 = vadd.f32 0.0, %v653
        %655 = vmatprep.mubr.f32.mxu0 0.0
        %656 = vmatmul.mubr.f32.gmra.mxu0 %v332
        %v657 = vpop.f32.mrf.mxu0
        %v658 = vadd.f32 0.0, %v657
        %v659 = vpop.f32.mrf.mxu0
        %v660 = vadd.f32 0.0, %v659
        %661 = vmatprep.mubr.f32.mxu0 0.0
        %662 = vmatmul.mubr.f32.gmra.mxu0 %v335
        %v663 = vpop.f32.mrf.mxu0
        %v664 = vadd.f32 0.0, %v663
        %v665 = vpop.f32.mrf.mxu0
        %v666 = vadd.f32 0.0, %v665
        %667 = vmatprep.mubr.f32.mxu0 0.0
        %668 = vmatmul.mubr.f32.gmra.mxu0 %v338
        %v669 = vpop.f32.mrf.mxu0
        %v670 = vadd.f32 0.0, %v669
        %v671 = vpop.f32.mrf.mxu0
        %v672 = vadd.f32 0.0, %v671
        %673 = vmatprep.mubr.f32.mxu0 0.0
        %674 = vmatmul.mubr.f32.gmra.mxu0 %v341
        %v675 = vpop.f32.mrf.mxu0
        %v676 = vadd.f32 0.0, %v675
        %v677 = vpop.f32.mrf.mxu0
        %v678 = vadd.f32 0.0, %v677
        %679 = vmatprep.mubr.f32.mxu0 0.0
        %680 = vmatmul.mubr.f32.gmra.mxu0 %v344
        %v681 = vpop.f32.mrf.mxu0
        %v682 = vadd.f32 0.0, %v681
        %v683 = vpop.f32.mrf.mxu0
        %v684 = vadd.f32 0.0, %v683
        %685 = vmatprep.mubr.f32.mxu0 0.0
        %686 = vmatmul.mubr.f32.gmra.mxu0 %v347
        %v687 = vpop.f32.mrf.mxu0
        %v688 = vadd.f32 0.0, %v687
        %v689 = vpop.f32.mrf.mxu0
        %v690 = vadd.f32 0.0, %v689
        %691 = vmatprep.mubr.f32.mxu0 0.0
        %692 = vmatmul.mubr.f32.gmra.mxu0 %v350
        %v693 = vpop.f32.mrf.mxu0
        %v694 = vadd.f32 0.0, %v693
        %v695 = vpop.f32.mrf.mxu0
        %v696 = vadd.f32 0.0, %v695
        %697 = vmatprep.mubr.f32.mxu0 0.0
        %698 = vmatmul.mubr.f32.gmra.mxu0 %v353
        %v699 = vpop.f32.mrf.mxu0
        %v700 = vadd.f32 0.0, %v699
        %v701 = vpop.f32.mrf.mxu0
        %v702 = vadd.f32 0.0, %v701
        %703 = vmatprep.mubr.f32.mxu0 0.0
        %704 = vmatmul.mubr.f32.gmra.mxu0 %v356
        %v705 = vpop.f32.mrf.mxu0
        %v706 = vadd.f32 0.0, %v705
        %v707 = vpop.f32.mrf.mxu0
        %v708 = vadd.f32 0.0, %v707
        %709 = vmatprep.mubr.f32.mxu0 0.0
        %710 = vmatmul.mubr.f32.gmra.mxu0 %v359
        %v711 = vpop.f32.mrf.mxu0
        %v712 = vadd.f32 0.0, %v711
        %v713 = vpop.f32.mrf.mxu0
        %v714 = vadd.f32 0.0, %v713
        %715 = vmatprep.mubr.f32.mxu0 0.0
        %716 = vmatmul.mubr.f32.gmra.mxu0 %v362
        %v717 = vpop.f32.mrf.mxu0
        %v718 = vadd.f32 0.0, %v717
        %v719 = vpop.f32.mrf.mxu0
        %v720 = vadd.f32 0.0, %v719
        %721 = vmatprep.mubr.f32.mxu0 0.0
        %722 = vmatmul.mubr.f32.gmra.mxu0 %v365
        %v723 = vpop.f32.mrf.mxu0
        %v724 = vadd.f32 0.0, %v723
        %v725 = vpop.f32.mrf.mxu0
        %v726 = vadd.f32 0.0, %v725
        %727 = vmatprep.mubr.f32.mxu0 0.0
        %728 = vmatmul.mubr.f32.gmra.mxu0 %v368
        %v729 = vpop.f32.mrf.mxu0
        %v730 = vadd.f32 0.0, %v729
        %v731 = vpop.f32.mrf.mxu0
        %v732 = vadd.f32 0.0, %v731
        %733 = vmatprep.mubr.f32.mxu0 0.0
        %734 = vmatmul.mubr.f32.gmra.mxu0 %v371
        %v735 = vpop.f32.mrf.mxu0
        %v736 = vadd.f32 0.0, %v735
        %v737 = vpop.f32.mrf.mxu0
        %v738 = vadd.f32 0.0, %v737
        %739 = vmatprep.mubr.f32.mxu0 0.0
        %740 = vmatmul.mubr.f32.gmra.mxu0 %v374
        %v741 = vpop.f32.mrf.mxu0
        %v742 = vadd.f32 0.0, %v741
        %v743 = vpop.f32.mrf.mxu0
        %v744 = vadd.f32 0.0, %v743
        %745 = vmatprep.mubr.f32.mxu0 0.0
        %746 = vmatmul.mubr.f32.gmra.mxu0 %v377
        %v747 = vpop.f32.mrf.mxu0
        %v748 = vadd.f32 0.0, %v747
        %v749 = vpop.f32.mrf.mxu0
        %v750 = vadd.f32 0.0, %v749
        %751 = vmatprep.mubr.f32.mxu0 0.0
        %752 = vmatmul.mubr.f32.gmra.mxu0 %v380
        %v753 = vpop.f32.mrf.mxu0
        %v754 = vadd.f32 0.0, %v753
        %v755 = vpop.f32.mrf.mxu0
        %v756 = vadd.f32 0.0, %v755
        %757 = vmatprep.mubr.f32.mxu0 0.0
        %758 = vmatmul.mubr.f32.gmra.mxu0 %v383
        %v759 = vpop.f32.mrf.mxu0
        %v760 = vadd.f32 0.0, %v759
        %v761 = vpop.f32.mrf.mxu0
        %v762 = vadd.f32 0.0, %v761
        %763 = vmatprep.mubr.f32.mxu0 0.0
        %764 = vmatmul.mubr.f32.gmra.mxu0 %v386
        %v765 = vpop.f32.mrf.mxu0
        %v766 = vadd.f32 0.0, %v765
        %v767 = vpop.f32.mrf.mxu0
        %v768 = vadd.f32 0.0, %v767
        %769 = vmatprep.mubr.f32.mxu0 0.0
        %770 = vmatmul.mubr.f32.gmra.mxu0 %v389
        %v771 = vpop.f32.mrf.mxu0
        %v772 = vadd.f32 0.0, %v771
        %v773 = vpop.f32.mrf.mxu0
        %v774 = vadd.f32 0.0, %v773
        %775 = vmatprep.mubr.f32.mxu0 0.0
        %776 = vmatmul.mubr.f32.gmra.mxu0 %v392
        %v777 = vpop.f32.mrf.mxu0
        %v778 = vadd.f32 0.0, %v777
        %v779 = vpop.f32.mrf.mxu0
        %v780 = vadd.f32 0.0, %v779
        %781 = vmatprep.mubr.f32.mxu0 0.0
        %782 = vmatmul.mubr.f32.gmra.mxu0 %v395
        %v783 = vpop.f32.mrf.mxu0
        %v784 = vadd.f32 0.0, %v783
        %v785 = vpop.f32.mrf.mxu0
        %v786 = vadd.f32 0.0, %v785
        %787 = vmatprep.mubr.f32.mxu0 0.0
        %788 = vmatmul.mubr.f32.gmra.mxu0 %v398
        %v789 = vpop.f32.mrf.mxu0
        %v790 = vadd.f32 0.0, %v789
        %v791 = vpop.f32.mrf.mxu0
        %v792 = vadd.f32 0.0, %v791
        %793 = vmatprep.mubr.f32.mxu0 0.0
        %794 = vmatmul.mubr.f32.gmra.mxu0 %v401
        %v795 = vpop.f32.mrf.mxu0
        %v796 = vadd.f32 0.0, %v795
        %v797 = vpop.f32.mrf.mxu0
        %v798 = vadd.f32 0.0, %v797
        %799 = vmatprep.mubr.f32.mxu0 0.0
        %800 = vmatmul.mubr.f32.gmra.mxu0 %v404
        %v801 = vpop.f32.mrf.mxu0
        %v802 = vadd.f32 0.0, %v801
        %v803 = vpop.f32.mrf.mxu0
        %v804 = vadd.f32 0.0, %v803
        %805 = vmatprep.mubr.f32.mxu0 0.0
        %806 = vmatmul.mubr.f32.gmra.mxu0 %v407
        %v807 = vpop.f32.mrf.mxu0
        %v808 = vadd.f32 0.0, %v807
        %v809 = vpop.f32.mrf.mxu0
        %v810 = vadd.f32 0.0, %v809
        %811 = vmatprep.mubr.f32.mxu0 0.0
        %812 = vmatmul.mubr.f32.gmra.mxu0 %v410
        %v813 = vpop.f32.mrf.mxu0
        %v814 = vadd.f32 0.0, %v813
        %v815 = vpop.f32.mrf.mxu0
        %v816 = vadd.f32 0.0, %v815
        %817 = vmatprep.mubr.f32.mxu0 0.0
        %818 = vmatmul.mubr.f32.gmra.mxu0 %v413
        %v819 = vpop.f32.mrf.mxu0
        %v820 = vadd.f32 0.0, %v819
        %v821 = vpop.f32.mrf.mxu0
        %v822 = vadd.f32 0.0, %v821
        %823 = vmatprep.mubr.f32.mxu0 0.0
        %824 = vmatmul.mubr.f32.gmra.mxu0 %v416
        %v825 = vpop.f32.mrf.mxu0
        %v826 = vadd.f32 0.0, %v825
        %v827 = vpop.f32.mrf.mxu0
        %v828 = vadd.f32 0.0, %v827
        %829 = vmatprep.mubr.f32.mxu0 0.0
        %830 = vmatmul.mubr.f32.gmra.mxu0 %v419
        %v831 = vpop.f32.mrf.mxu0
        %v832 = vadd.f32 0.0, %v831
        %v833 = vpop.f32.mrf.mxu0
        %v834 = vadd.f32 0.0, %v833
        %835 = vmatprep.mubr.f32.mxu0 0.0
        %836 = vmatmul.mubr.f32.gmra.mxu0 %v422
        %v837 = vpop.f32.mrf.mxu0
        %v838 = vadd.f32 0.0, %v837
        %v839 = vpop.f32.mrf.mxu0
        %v840 = vadd.f32 0.0, %v839
        %841 = vmatprep.mubr.f32.mxu0 0.0
        %842 = vmatmul.mubr.f32.gmra.mxu0 %v425
        %v843 = vpop.f32.mrf.mxu0
        %v844 = vadd.f32 0.0, %v843
        %v845 = vpop.f32.mrf.mxu0
        %v846 = vadd.f32 0.0, %v845
        %847 = vmatprep.mubr.f32.mxu0 0.0
        %848 = vmatmul.mubr.f32.gmra.mxu0 %v428
        %v849 = vpop.f32.mrf.mxu0
        %v850 = vadd.f32 0.0, %v849
        %v851 = vpop.f32.mrf.mxu0
        %v852 = vadd.f32 0.0, %v851
        %853 = vmatprep.mubr.f32.mxu0 0.0
        %854 = vmatmul.mubr.f32.gmra.mxu0 %v431
        %v855 = vpop.f32.mrf.mxu0
        %v856 = vadd.f32 0.0, %v855
        %v857 = vpop.f32.mrf.mxu0
        %v858 = vadd.f32 0.0, %v857
        %859 = vmatprep.mubr.f32.mxu0 0.0
        %860 = vmatmul.mubr.f32.gmra.mxu0 %v434
        %v861 = vpop.f32.mrf.mxu0
        %v862 = vadd.f32 0.0, %v861
        %v863 = vpop.f32.mrf.mxu0
        %v864 = vadd.f32 0.0, %v863
        %865 = vmatprep.mubr.f32.mxu0 0.0
        %866 = vmatmul.mubr.f32.gmra.mxu0 %v437
        %v867 = vpop.f32.mrf.mxu0
        %v868 = vadd.f32 0.0, %v867
        %v869 = vpop.f32.mrf.mxu0
        %v870 = vadd.f32 0.0, %v869
        %871 = vmatprep.mubr.f32.mxu0 0.0
        %872 = vmatmul.mubr.f32.gmra.mxu0 %v440
        %v873 = vpop.f32.mrf.mxu0
        %v874 = vadd.f32 0.0, %v873
        %v875 = vpop.f32.mrf.mxu0
        %v876 = vadd.f32 0.0, %v875
        %877 = vmatprep.mubr.f32.mxu0 0.0
        %878 = vmatmul.mubr.f32.gmra.mxu0 %v443
        %v879 = vpop.f32.mrf.mxu0
        %v880 = vadd.f32 0.0, %v879
        %v881 = vpop.f32.mrf.mxu0
        %v882 = vadd.f32 0.0, %v881
        %883 = vmatprep.mubr.f32.mxu0 0.0
        %884 = vmatmul.mubr.f32.gmra.mxu0 %v446
        %v885 = vpop.f32.mrf.mxu0
        %v886 = vadd.f32 0.0, %v885
        %v887 = vpop.f32.mrf.mxu0
        %v888 = vadd.f32 0.0, %v887
        %889 = vmatprep.mubr.f32.mxu0 0.0
        %890 = vmatmul.mubr.f32.gmra.mxu0 %v449
        %v891 = vpop.f32.mrf.mxu0
        %v892 = vadd.f32 0.0, %v891
        %v893 = vpop.f32.mrf.mxu0
        %v894 = vadd.f32 0.0, %v893
        %895 = vmatprep.mubr.f32.mxu0 0.0
        %896 = vmatmul.mubr.f32.gmra.mxu0 %v452
        %v897 = vpop.f32.mrf.mxu0
        %v898 = vadd.f32 0.0, %v897
        %v899 = vpop.f32.mrf.mxu0
        %v900 = vadd.f32 0.0, %v899
        %901 = vmatprep.mubr.f32.mxu0 0.0
        %902 = vmatmul.mubr.f32.gmra.mxu0 %v455
        %v903 = vpop.f32.mrf.mxu0
        %v904 = vadd.f32 0.0, %v903
        %v905 = vpop.f32.mrf.mxu0
        %v906 = vadd.f32 0.0, %v905
        %907 = vmatprep.mubr.f32.mxu0 0.0
        %908 = vmatmul.mubr.f32.gmra.mxu0 %v458
        %v909 = vpop.f32.mrf.mxu0
        %v910 = vadd.f32 0.0, %v909
        %v911 = vpop.f32.mrf.mxu0
        %v912 = vadd.f32 0.0, %v911
        %913 = vdwg.mxu0
        %v914 = vmax.f32 %v532, 0.0
        %v915 = vmax.f32 %v534, 0.0
        %v916 = vmax.f32 %v538, 0.0
        %v917 = vmax.f32 %v540, 0.0
        %v918 = vmax.f32 %v544, 0.0
        %v919 = vmax.f32 %v546, 0.0
        %v920 = vmax.f32 %v550, 0.0
        %v921 = vmax.f32 %v552, 0.0
        %v922 = vmax.f32 %v556, 0.0
        %v923 = vmax.f32 %v558, 0.0
        %v924 = vmax.f32 %v562, 0.0
        %v925 = vmax.f32 %v564, 0.0
        %v926 = vmax.f32 %v568, 0.0
        %v927 = vmax.f32 %v570, 0.0
        %v928 = vmax.f32 %v574, 0.0
        %v929 = vmax.f32 %v576, 0.0
        %v930 = vmax.f32 %v580, 0.0
        %v931 = vmax.f32 %v582, 0.0
        %v932 = vmax.f32 %v586, 0.0
        %v933 = vmax.f32 %v588, 0.0
        %v934 = vmax.f32 %v592, 0.0
        %v935 = vmax.f32 %v594, 0.0
        %v936 = vmax.f32 %v598, 0.0
        %v937 = vmax.f32 %v600, 0.0
        %v938 = vmax.f32 %v604, 0.0
        %v939 = vmax.f32 %v606, 0.0
        %v940 = vmax.f32 %v610, 0.0
        %v941 = vmax.f32 %v612, 0.0
        %v942 = vmax.f32 %v616, 0.0
        %v943 = vmax.f32 %v618, 0.0
        %v944 = vmax.f32 %v622, 0.0
        %v945 = vmax.f32 %v624, 0.0
        %v946 = vmax.f32 %v628, 0.0
        %v947 = vmax.f32 %v630, 0.0
        %v948 = vmax.f32 %v634, 0.0
        %v949 = vmax.f32 %v636, 0.0
        %v950 = vmax.f32 %v640, 0.0
        %v951 = vmax.f32 %v642, 0.0
        %v952 = vmax.f32 %v646, 0.0
        %v953 = vmax.f32 %v648, 0.0
        %v954 = vmax.f32 %v652, 0.0
        %v955 = vmax.f32 %v654, 0.0
        %v956 = vmax.f32 %v658, 0.0
        %v957 = vmax.f32 %v660, 0.0
        %v958 = vmax.f32 %v664, 0.0
        %v959 = vmax.f32 %v666, 0.0
        %v960 = vmax.f32 %v670, 0.0
        %v961 = vmax.f32 %v672, 0.0
        %v962 = vmax.f32 %v676, 0.0
        %v963 = vmax.f32 %v678, 0.0
        %v964 = vmax.f32 %v682, 0.0
        %v965 = vmax.f32 %v684, 0.0
        %v966 = vmax.f32 %v688, 0.0
        %v967 = vmax.f32 %v690, 0.0
        %v968 = vmax.f32 %v694, 0.0
        %v969 = vmax.f32 %v696, 0.0
        %v970 = vmax.f32 %v700, 0.0
        %v971 = vmax.f32 %v702, 0.0
        %v972 = vmax.f32 %v706, 0.0
        %v973 = vmax.f32 %v708, 0.0
        %v974 = vmax.f32 %v712, 0.0
        %v975 = vmax.f32 %v714, 0.0
        %v976 = vmax.f32 %v718, 0.0
        %v977 = vmax.f32 %v720, 0.0
        %v978 = vmax.f32 %v724, 0.0
        %v979 = vmax.f32 %v726, 0.0
        %v980 = vmax.f32 %v730, 0.0
        %v981 = vmax.f32 %v732, 0.0
        %v982 = vmax.f32 %v736, 0.0
        %v983 = vmax.f32 %v738, 0.0
        %v984 = vmax.f32 %v742, 0.0
        %v985 = vmax.f32 %v744, 0.0
        %v986 = vmax.f32 %v748, 0.0
        %v987 = vmax.f32 %v750, 0.0
        %v988 = vmax.f32 %v754, 0.0
        %v989 = vmax.f32 %v756, 0.0
        %v990 = vmax.f32 %v760, 0.0
        %v991 = vmax.f32 %v762, 0.0
        %v992 = vmax.f32 %v766, 0.0
        %v993 = vmax.f32 %v768, 0.0
        %v994 = vmax.f32 %v772, 0.0
        %v995 = vmax.f32 %v774, 0.0
        %v996 = vmax.f32 %v778, 0.0
        %v997 = vmax.f32 %v780, 0.0
        %v998 = vmax.f32 %v784, 0.0
        %v999 = vmax.f32 %v786, 0.0
        %v1000 = vmax.f32 %v790, 0.0
        %v1001 = vmax.f32 %v792, 0.0
        %v1002 = vmax.f32 %v796, 0.0
        %v1003 = vmax.f32 %v798, 0.0
        %v1004 = vmax.f32 %v802, 0.0
        %v1005 = vmax.f32 %v804, 0.0
        %v1006 = vmax.f32 %v808, 0.0
        %v1007 = vmax.f32 %v810, 0.0
        %v1008 = vmax.f32 %v814, 0.0
        %v1009 = vmax.f32 %v816, 0.0
        %v1010 = vmax.f32 %v820, 0.0
        %v1011 = vmax.f32 %v822, 0.0
        %v1012 = vmax.f32 %v826, 0.0
        %v1013 = vmax.f32 %v828, 0.0
        %v1014 = vmax.f32 %v832, 0.0
        %v1015 = vmax.f32 %v834, 0.0
        %v1016 = vmax.f32 %v838, 0.0
        %v1017 = vmax.f32 %v840, 0.0
        %v1018 = vmax.f32 %v844, 0.0
        %v1019 = vmax.f32 %v846, 0.0
        %v1020 = vmax.f32 %v850, 0.0
        %v1021 = vmax.f32 %v852, 0.0
        %v1022 = vmax.f32 %v856, 0.0
        %v1023 = vmax.f32 %v858, 0.0
        %v1024 = vmax.f32 %v862, 0.0
        %v1025 = vmax.f32 %v864, 0.0
        %v1026 = vmax.f32 %v868, 0.0
        %v1027 = vmax.f32 %v870, 0.0
        %v1028 = vmax.f32 %v874, 0.0
        %v1029 = vmax.f32 %v876, 0.0
        %v1030 = vmax.f32 %v880, 0.0
        %v1031 = vmax.f32 %v882, 0.0
        %v1032 = vmax.f32 %v886, 0.0
        %v1033 = vmax.f32 %v888, 0.0
        %v1034 = vmax.f32 %v892, 0.0
        %v1035 = vmax.f32 %v894, 0.0
        %v1036 = vmax.f32 %v898, 0.0
        %v1037 = vmax.f32 %v900, 0.0
        %v1038 = vmax.f32 %v904, 0.0
        %v1039 = vmax.f32 %v906, 0.0
        %v1040 = vmax.f32 %v910, 0.0
        %v1041 = vmax.f32 %v912, 0.0
        %v1042 = vld [vmem:[%s2] sm:$0xff]
        %v1044 = vcombine.high %v1042, %v1042
        %v1046 = vunpack.c.l.s4 1983009808
        %v1047 = vunpack.c.0.s8 %v1046
        %v1048 = vlaneseq
        %v1049 = vshrl.u32 %v1048, 7
        %v1050 = vsub.s32 %v1047, %v1049
        %v1051 = vrot.slane %v1042, %v1050
        %v1053 = vunpack.c.l.s4 1983009808
        %v1054 = vunpack.c.0.s8 %v1053
        %v1055 = vlaneseq
        %v1056 = vshrl.u32 %v1055, 7
        %v1057 = vsub.s32 %v1054, %v1056
        %v1058 = vrot.slane %v1044, %v1057
        %v1059 = vcombine.high %v1051, %v1051
        %v1060 = vcombine.high %v1058, %v1058
        %1065 = vmatprep.subr.mxu0 %v945
        %1066 = vmatpush1.msra.mxu0 %v944
        %1067 = vmatprep.subr.mxu0 %v943
        %1068 = vmatpush1.msra.mxu0 %v942
        %1069 = vmatprep.subr.mxu0 %v941
        %1070 = vmatpush1.msra.mxu0 %v940
        %1071 = vmatprep.subr.mxu0 %v939
        %1072 = vmatpush1.msra.mxu0 %v938
        %1073 = vmatprep.subr.mxu0 %v937
        %1074 = vmatpush1.msra.mxu0 %v936
        %1075 = vmatprep.subr.mxu0 %v935
        %1076 = vmatpush1.msra.mxu0 %v934
        %1077 = vmatprep.subr.mxu0 %v933
        %1078 = vmatpush1.msra.mxu0 %v932
        %1079 = vmatprep.subr.mxu0 %v931
        %1080 = vmatpush1.msra.mxu0 %v930
        %1081 = vmatprep.subr.mxu0 %v929
        %1082 = vmatpush1.msra.mxu0 %v928
        %1083 = vmatprep.subr.mxu0 %v927
        %1084 = vmatpush1.msra.mxu0 %v926
        %1085 = vmatprep.subr.mxu0 %v925
        %1086 = vmatpush1.msra.mxu0 %v924
        %1087 = vmatprep.subr.mxu0 %v923
        %1088 = vmatpush1.msra.mxu0 %v922
        %1089 = vmatprep.subr.mxu0 %v921
        %1090 = vmatpush1.msra.mxu0 %v920
        %1091 = vmatprep.subr.mxu0 %v919
        %1092 = vmatpush1.msra.mxu0 %v918
        %1093 = vmatprep.subr.mxu0 %v917
        %1094 = vmatpush1.msra.mxu0 %v916
        %1095 = vmatprep.subr.mxu0 %v915
        %1096 = vmatpush1.msra.mxu0 %v914
        %1097 = vmatprep.subr.mxu0 %v977
        %1098 = vmatpush2.msra.mxu0 %v976
        %1099 = vmatprep.subr.mxu0 %v975
        %1100 = vmatpush2.msra.mxu0 %v974
        %1101 = vmatprep.subr.mxu0 %v973
        %1102 = vmatpush2.msra.mxu0 %v972
        %1103 = vmatprep.subr.mxu0 %v971
        %1104 = vmatpush2.msra.mxu0 %v970
        %1105 = vmatprep.subr.mxu0 %v969
        %1106 = vmatpush2.msra.mxu0 %v968
        %1107 = vmatprep.subr.mxu0 %v967
        %1108 = vmatpush2.msra.mxu0 %v966
        %1109 = vmatprep.subr.mxu0 %v965
        %1110 = vmatpush2.msra.mxu0 %v964
        %1111 = vmatprep.subr.mxu0 %v963
        %1112 = vmatpush2.msra.mxu0 %v962
        %1113 = vmatprep.subr.mxu0 %v961
        %1114 = vmatpush2.msra.mxu0 %v960
        %1115 = vmatprep.subr.mxu0 %v959
        %1116 = vmatpush2.msra.mxu0 %v958
        %1117 = vmatprep.subr.mxu0 %v957
        %1118 = vmatpush2.msra.mxu0 %v956
        %1119 = vmatprep.subr.mxu0 %v955
        %1120 = vmatpush2.msra.mxu0 %v954
        %1121 = vmatprep.subr.mxu0 %v953
        %1122 = vmatpush2.msra.mxu0 %v952
        %1123 = vmatprep.subr.mxu0 %v951
        %1124 = vmatpush2.msra.mxu0 %v950
        %1125 = vmatprep.subr.mxu0 %v949
        %1126 = vmatpush2.msra.mxu0 %v948
        %1127 = vmatprep.subr.mxu0 %v947
        %1128 = vmatpush2.msra.mxu0 %v946
        %1129 = vmatprep.mubr.f32.mxu0 %v1059
        %1130 = vmatmul.mubr.f32.gmra.mxu0 %v1051
        %v1131 = vpop.f32.mrf.mxu0
        %v1132 = vadd.f32 0.0, %v1131
        %v1133 = vpop.f32.mrf.mxu0
        %v1134 = vadd.f32 0.0, %v1133
        %1135 = vdwg.mxu0
        %1136 = vmatprep.subr.mxu0 %v1009
        %1137 = vmatpush1.msra.mxu0 %v1008
        %1138 = vmatprep.subr.mxu0 %v1007
        %1139 = vmatpush1.msra.mxu0 %v1006
        %1140 = vmatprep.subr.mxu0 %v1005
        %1141 = vmatpush1.msra.mxu0 %v1004
        %1142 = vmatprep.subr.mxu0 %v1003
        %1143 = vmatpush1.msra.mxu0 %v1002
        %1144 = vmatprep.subr.mxu0 %v1001
        %1145 = vmatpush1.msra.mxu0 %v1000
        %1146 = vmatprep.subr.mxu0 %v999
        %1147 = vmatpush1.msra.mxu0 %v998
        %1148 = vmatprep.subr.mxu0 %v997
        %1149 = vmatpush1.msra.mxu0 %v996
        %1150 = vmatprep.subr.mxu0 %v995
        %1151 = vmatpush1.msra.mxu0 %v994
        %1152 = vmatprep.subr.mxu0 %v993
        %1153 = vmatpush1.msra.mxu0 %v992
        %1154 = vmatprep.subr.mxu0 %v991
        %1155 = vmatpush1.msra.mxu0 %v990
        %1156 = vmatprep.subr.mxu0 %v989
        %1157 = vmatpush1.msra.mxu0 %v988
        %1158 = vmatprep.subr.mxu0 %v987
        %1159 = vmatpush1.msra.mxu0 %v986
        %1160 = vmatprep.subr.mxu0 %v985
        %1161 = vmatpush1.msra.mxu0 %v984
        %1162 = vmatprep.subr.mxu0 %v983
        %1163 = vmatpush1.msra.mxu0 %v982
        %1164 = vmatprep.subr.mxu0 %v981
        %1165 = vmatpush1.msra.mxu0 %v980
        %1166 = vmatprep.subr.mxu0 %v979
        %1167 = vmatpush1.msra.mxu0 %v978
        %1168 = vmatprep.subr.mxu0 %v1041
        %1169 = vmatpush2.msra.mxu0 %v1040
        %1170 = vmatprep.subr.mxu0 %v1039
        %1171 = vmatpush2.msra.mxu0 %v1038
        %1172 = vmatprep.subr.mxu0 %v1037
        %1173 = vmatpush2.msra.mxu0 %v1036
        %1174 = vmatprep.subr.mxu0 %v1035
        %1175 = vmatpush2.msra.mxu0 %v1034
        %1176 = vmatprep.subr.mxu0 %v1033
        %1177 = vmatpush2.msra.mxu0 %v1032
        %1178 = vmatprep.subr.mxu0 %v1031
        %1179 = vmatpush2.msra.mxu0 %v1030
        %1180 = vmatprep.subr.mxu0 %v1029
        %1181 = vmatpush2.msra.mxu0 %v1028
        %1182 = vmatprep.subr.mxu0 %v1027
        %1183 = vmatpush2.msra.mxu0 %v1026
        %1184 = vmatprep.subr.mxu0 %v1025
        %1185 = vmatpush2.msra.mxu0 %v1024
        %1186 = vmatprep.subr.mxu0 %v1023
        %1187 = vmatpush2.msra.mxu0 %v1022
        %1188 = vmatprep.subr.mxu0 %v1021
        %1189 = vmatpush2.msra.mxu0 %v1020
        %1190 = vmatprep.subr.mxu0 %v1019
        %1191 = vmatpush2.msra.mxu0 %v1018
        %1192 = vmatprep.subr.mxu0 %v1017
        %1193 = vmatpush2.msra.mxu0 %v1016
        %1194 = vmatprep.subr.mxu0 %v1015
        %1195 = vmatpush2.msra.mxu0 %v1014
        %1196 = vmatprep.subr.mxu0 %v1013
        %1197 = vmatpush2.msra.mxu0 %v1012
        %1198 = vmatprep.subr.mxu0 %v1011
        %1199 = vmatpush2.msra.mxu0 %v1010
        %1200 = vmatprep.mubr.f32.mxu0 %v1060
        %1201 = vmatmul.mubr.f32.gmra.mxu0 %v1058
        %v1202 = vpop.f32.mrf.mxu0
        %v1203 = vadd.f32 %v1132, %v1202
        %v1204 = vpop.f32.mrf.mxu0
        %v1205 = vadd.f32 %v1134, %v1204
        %1206 = vdwg.mxu0
        %v1209 = vcombine.low %v1203, %v1205
        %v1211 = vunpack.c.l.s4 1983009808
        %v1212 = vunpack.c.0.s8 %v1211
        %v1213 = vlaneseq
        %v1214 = vshrl.u32 %v1213, 7
        %v1215 = vsub.s32 %v1212, %v1214
        %v1216 = vrot.slane %v1209, %v1215
        %1218 = vst [vmem:[%s188] sm:$0xf] %v1216
        %s1219 = sand.u32 %s109, 1
        %s1220 = scalar_lea.sflag [#allocation3], %s1219
        %s1221 = sand.u32 %s109, 1
        %s1222 = smul.addr %s1221, 4
        %s1223 = scalar_lea.vmem [#allocation2], %s1222
        // Predicated region
        $region33: #{tpu_custom_call.1} parent=31 // pred_check
          %p1224 = pneg %p119
        $region34: #{tpu_custom_call.1} parent=31 // pred_check_branch
          %1226 = sbr.rel (%p1224) target = $region36
        $region35: #{tpu_custom_call.1} parent=31 // pred_region
          %s1227 = smul.u32 2, %s22
          %s1229 = ssub.s32 64, 64
          %1230 = vsyncadd %s1220, %s1229
          %s1231 = smul.addr %s21, 2
          %s1232 = sadd.s32 %s1227, %s1231
          %s1233 = smul.addr %s1232, 32
          %s1234 = scalar_lea.hbm %s3, %s1233
          %s1236 = sshll.u32 %s1223, 4
          %s1237 = int_to_ptr.vmem [resolvable:$true] %s1236
          %1239 = dma.vmem_to_hbm [thread:$0]  %s1237, 64, %s1234, %s1220
        $region36: #{tpu_custom_call.1} parent=31 // pred_fallthru
          _
      $region32: #{tpu_custom_call.1} parent=5 // pred_fallthru
        _
      %p1240 = scmp.le.s32.totalorder 2, %s12
      // Predicated region
      $region37: #{tpu_custom_call.1} parent=5 // pred_check
        %p1241 = pneg %p1240
      $region38: #{tpu_custom_call.1} parent=5 // pred_check_branch
        %1243 = sbr.rel (%p1241) target = $region40
      $region39: #{tpu_custom_call.1} parent=5 // pred_region
        %s1244 = ssub.s32 %s12, 2
        // Predicated region
        $region41: #{tpu_custom_call.1} parent=39 // pred_check
          %p1245 = pneg %p125
        $region42: #{tpu_custom_call.1} parent=39 // pred_check_branch
          %1247 = sbr.rel (%p1245) target = $region44
        $region43: #{tpu_custom_call.1} parent=39 // pred_region
          %s1248 = sand.u32 %s110, 1
          %s1249 = scalar_lea.sflag [#allocation3], %s1248
          %s1250 = sand.u32 %s110, 1
          %s1251 = smul.addr %s1250, 4
          %s1252 = scalar_lea.vmem [#allocation2], %s1251
          %1253 = dma.done %s1249, 64
        $region44: #{tpu_custom_call.1} parent=39 // pred_fallthru
          _
      $region40: #{tpu_custom_call.1} parent=5 // pred_fallthru
        _
    $region6: #{tpu_custom_call.1} parent=1 // loop_footer
      %s16 = sadd.s32 1, %s12
    $region7: #{tpu_custom_call.1} parent=1 // loop_footer_branch
      %11 = sbr.rel target = $region3
    $region8: #{tpu_custom_call.1} parent=1 // loop_exit
      _
    %1254 = vsyncpa [#allocation3], 1
    %s1255 = scalar_lea.sflag [#allocation3], 1
    %1256 = vsyncpa %s1255, 1

</llo_original>
